<compile_context>
chip_gen: v7x
topology: tpu7x:2x2x1
jax: 0.10.0
libtpu: 0.0.40
codegen_flags: <defaults>
</compile_context>

<pallas_src>
import jax
import jax.numpy as jnp
import numpy as np
from jax.experimental import pallas as pl
from jax.experimental.pallas import tpu as pltpu

POOL = 4

# Sizing ceiling for the per-step VMEM inventory; safe on every generation
# (v7x has 64 MiB physical VMEM per TensorCore).
_SIZING_VMEM_BYTES = 48 * 2 ** 20
# Target bytes of *each* input stream per grid step (mem-bound kernel:
# multi-MiB tiles are needed to sit at the HBM roofline).
_TARGET_STREAM_BYTES = 16 * 2 ** 20
_MIN_STREAM_BYTES_FOR_SPLIT = 8 * 2 ** 20


def _l_spa_kernel(pwt_ref, org_ref, enh_ref, e_ref, t_ref):
    # pwt_ref : (W, W4)       pooling matrix, 1/(C*16) folded in, grid-resident
    # org_ref : (Bt, C, H, W)
    # enh_ref : (Bt, C, H, W)
    # e_ref   : (Bt, H4, W4)  output block (channel dim squeezed)
    # t_ref   : (Bt, H, W4)   VMEM scratch holding the W-pooled fused map
    Bt, C, H, W = org_ref.shape
    _, H4, W4 = e_ref.shape

    # Fused channel-sum difference (1/C is folded into the pooling matrix).
    m = jnp.sum(org_ref[...], axis=1) - jnp.sum(enh_ref[...], axis=1)     # (Bt, H, W)

    # W-direction pooling: one flat MXU matmul.  The (Bt, H, W) -> (Bt*H, W)
    # merge keeps the lane dim and concatenates whole sublane tiles (H % 8 == 0
    # for any realistic image), so it is layout-free.
    t = jnp.dot(m.reshape(Bt * H, W), pwt_ref[...],
                preferred_element_type=jnp.float32)                        # (Bt*H, W4)
    t_ref[...] = t.reshape(Bt, H, W4)

    # H-direction pooling: four sublane-strided reads (rows k, k+4, k+8, ...).
    d = (t_ref[:, pl.ds(0, H4, POOL), :]
         + t_ref[:, pl.ds(1, H4, POOL), :]
         + t_ref[:, pl.ds(2, H4, POOL), :]
         + t_ref[:, pl.ds(3, H4, POOL), :])                                # (Bt, H4, W4)

    # conv2d(3x3, padding=1) difference kernels == center - zero-padded neighbor.
    # Neighbors built in registers via zero-column / zero-row concatenation.
    zcol = jnp.zeros((Bt, H4, 1), jnp.float32)
    zrow = jnp.zeros((Bt, 1, W4), jnp.float32)
    left_nb = jnp.concatenate([zcol, d[:, :, :W4 - 1]], axis=2)   # d[..., x-1], 0 at x==0
    right_nb = jnp.concatenate([d[:, :, 1:], zcol], axis=2)       # d[..., x+1], 0 at x==W4-1
    up_nb = jnp.concatenate([zrow, d[:, :H4 - 1, :]], axis=1)     # d[:, y-1, :], 0 at y==0
    down_nb = jnp.concatenate([d[:, 1:, :], zrow], axis=1)        # d[:, y+1, :], 0 at y==H4-1

    dl = d - left_nb
    dr = d - right_nb
    du = d - up_nb
    dd = d - down_nb
    e_ref[...] = dl * dl + dr * dr + du * du + dd * dd


def _vmem_inventory_bytes(bt, C, H, W):
    """Explicit per-grid-step VMEM buffer inventory (f32 everywhere)."""
    H4, W4 = H // POOL, W // POOL
    stream = bt * C * H * W * 4
    return (2 * 2 * stream            # org + enhance, double-buffered by the pipeline
            + bt * H * W * 4          # m (fused channel-sum difference)
            + 2 * bt * H * W4 * 4     # t value + t_ref scratch
            + 12 * bt * H4 * W4 * 4   # d, neighbors, diffs, output double-buffer
            + 2 * W * W4 * 4)         # resident pooling matrix


def _choose_batch_block(B, C, H, W):
    """Batch elements per grid step: as large as the VMEM budget / stream
    target allow (amortizes the fixed per-step pipeline overhead); keep >= 2
    grid steps (v7x megacore) only when that does not shrink blocks below the
    mem-bound roofline regime."""
    stream = C * H * W * 4
    per_bt = max(1, _vmem_inventory_bytes(1, C, H, W))
    bt_vmem = max(1, (_SIZING_VMEM_BYTES - (2 << 20)) // per_bt)
    bt_target = max(1, _TARGET_STREAM_BYTES // stream)
    bt = int(max(1, min(B, bt_vmem, bt_target)))
    if B >= 2 and bt >= B and (B // 2) * stream >= _MIN_STREAM_BYTES_FOR_SPLIT:
        bt = B // 2
    while B % bt:
        bt -= 1
    return bt


def l_spa(org, enhance):
    B, C, H, W = org.shape
    assert enhance.shape == org.shape
    assert H % POOL == 0 and W % POOL == 0, "H, W must be divisible by 4"
    H4, W4 = H // POOL, W // POOL

    bt = _choose_batch_block(B, C, H, W)
    grid = (B // bt,)

    # W-direction pooling matrix with the 1/C channel-mean and the full 1/16
    # average-pooling normalisation folded in (built once, host-side).
    pwt = np.zeros((W, W4), np.float32)
    scale = 1.0 / (C * POOL * POOL)
    for q in range(W4):
        pwt[q * POOL:(q + 1) * POOL, q] = scale
    pwt = jnp.asarray(pwt)

    vmem_limit = _vmem_inventory_bytes(bt, C, H, W)
    vmem_limit = int(min(128 * 2 ** 20,
                         max(32 * 2 ** 20, vmem_limit * 5 // 4 + (2 << 20))))

    return pl.pallas_call(
        _l_spa_kernel,
        out_shape=jax.ShapeDtypeStruct((B, 1, H4, W4), jnp.float32),
        grid=grid,
        in_specs=[
            pl.BlockSpec((W, W4), lambda i: (0, 0)),             # resident pooling matrix
            pl.BlockSpec((bt, C, H, W), lambda i: (i, 0, 0, 0)),
            pl.BlockSpec((bt, C, H, W), lambda i: (i, 0, 0, 0)),
        ],
        out_specs=pl.BlockSpec((bt, None, H4, W4), lambda i: (i, 0, 0, 0)),
        scratch_shapes=[pltpu.VMEM((bt, H, W4), jnp.float32)],
        compiler_params=pltpu.CompilerParams(
            dimension_semantics=("parallel",),
            vmem_limit_bytes=vmem_limit,
        ),
    )(pwt, org, enhance)


def _reference(org, enhance):
    """Pure-JAX reference matching the PyTorch forward (returned value E only)."""
    B, C, H, W = org.shape
    H4, W4 = H // POOL, W // POOL
    om = jnp.mean(org, axis=1, keepdims=True)
    em = jnp.mean(enhance, axis=1, keepdims=True)

    def pool(x):
        return x.reshape(B, 1, H4, POOL, W4, POOL).mean(axis=(3, 5))

    d = pool(om) - pool(em)                                  # (B,1,H4,W4)

    def neighbor(x, dy, dx):
        xp = jnp.pad(x, ((0, 0), (0, 0), (1, 1), (1, 1)))
        return xp[:, :, 1 + dy:1 + dy + H4, 1 + dx:1 + dx + W4]

    d_left = d - neighbor(d, 0, -1)
    d_right = d - neighbor(d, 0, 1)
    d_up = d - neighbor(d, -1, 0)
    d_down = d - neighbor(d, 1, 0)
    return d_left ** 2 + d_right ** 2 + d_up ** 2 + d_down ** 2


if __name__ == "__main__":
    key = jax.random.PRNGKey(0)
    k1, k2 = jax.random.split(key)
    B, C, H, W = 2, 4, 16, 16
    org = jax.random.uniform(k1, (B, C, H, W), dtype=jnp.float32)
    enhance = jax.random.uniform(k2, (B, C, H, W), dtype=jnp.float32)

    out = jax.block_until_ready(l_spa(org, enhance))
    ref = jax.block_until_ready(_reference(org, enhance))

    assert out.shape == (B, 1, H // POOL, W // POOL)
    np.testing.assert_allclose(np.asarray(out), np.asarray(ref), rtol=1e-5, atol=1e-5)
    print("KERNEL_OK")
</pallas_src>

<mosaic_0001>
module attributes {stable_mosaic.version = 11 : i64} {
  func.func @_l_spa_kernel(%arg0: i32, %arg1: memref<16x4xf32, #tpu.memory_space<vmem>>, %arg2: memref<2x4x16x16xf32, #tpu.memory_space<vmem>>, %arg3: memref<2x4x16x16xf32, #tpu.memory_space<vmem>>, %arg4: memref<2x1x4x4xf32, #tpu.memory_space<vmem>>, %arg5: memref<2x16x4xf32, #tpu.memory_space<vmem>>) attributes {dimension_semantics = [#tpu.dimension_semantics<parallel>], iteration_bounds = array<i64: 1>, scalar_prefetch = 0 : i64, scratch_operands = 1 : i64, tpu.core_type = #tpu.core_type<tc>, window_params = [{pipeline_mode = #tpu.pipeline_mode<synchronous>, transform_indices = @transform_0, window_bounds = array<i64: 16, 4>}, {transform_indices = @transform_1, window_bounds = array<i64: 2, 4, 16, 16>}, {transform_indices = @transform_2, window_bounds = array<i64: 2, 4, 16, 16>}, {transform_indices = @transform_3, window_bounds = array<i64: 2, 1, 4, 4>}]} {
    %c0 = arith.constant 0 : index
    %c0_0 = arith.constant 0 : index
    %c0_1 = arith.constant 0 : index
    %c0_2 = arith.constant 0 : index
    %0 = vector.load %arg2[%c0, %c0_0, %c0_1, %c0_2] : memref<2x4x16x16xf32, #tpu.memory_space<vmem>>, vector<2x4x16x16xf32>
    %cst = arith.constant dense<0.000000e+00> : vector<2x16x16xf32>
    %1 = vector.multi_reduction <add>, %0, %cst [1] : vector<2x4x16x16xf32> to vector<2x16x16xf32>
    %c0_3 = arith.constant 0 : index
    %c0_4 = arith.constant 0 : index
    %c0_5 = arith.constant 0 : index
    %c0_6 = arith.constant 0 : index
    %2 = vector.load %arg3[%c0_3, %c0_4, %c0_5, %c0_6] : memref<2x4x16x16xf32, #tpu.memory_space<vmem>>, vector<2x4x16x16xf32>
    %cst_7 = arith.constant dense<0.000000e+00> : vector<2x16x16xf32>
    %3 = vector.multi_reduction <add>, %2, %cst_7 [1] : vector<2x4x16x16xf32> to vector<2x16x16xf32>
    %4 = arith.subf %1, %3 : vector<2x16x16xf32>
    %5 = vector.shape_cast %4 : vector<2x16x16xf32> to vector<32x16xf32>
    %c0_8 = arith.constant 0 : index
    %c0_9 = arith.constant 0 : index
    %6 = vector.load %arg1[%c0_8, %c0_9] : memref<16x4xf32, #tpu.memory_space<vmem>>, vector<16x4xf32>
    %cst_10 = arith.constant dense<0.000000e+00> : vector<32x4xf32>
    %7 = tpu.matmul %5, %6, %cst_10 {dimension_numbers = #tpu.dot_dimension_numbers<[1], [0], [0], [1], [0, 0, 1, 1], [], []>} : vector<32x16xf32>, vector<16x4xf32>, vector<32x4xf32> -> vector<32x4xf32>
    %8 = vector.shape_cast %7 : vector<32x4xf32> to vector<2x16x4xf32>
    %c0_11 = arith.constant 0 : index
    %c0_12 = arith.constant 0 : index
    %c0_13 = arith.constant 0 : index
    %9 = vector.load %arg5[%c0_11, %c0_12, %c0_13] : memref<2x16x4xf32, #tpu.memory_space<vmem>>, vector<2x16x4xf32>
    tpu.vector_store %arg5[%c0_11, %c0_12, %c0_13], %8 {strides = array<i32>} : memref<2x16x4xf32, #tpu.memory_space<vmem>>, vector<2x16x4xf32>,
    %c0_14 = arith.constant 0 : index
    %c0_15 = arith.constant 0 : index
    %c0_16 = arith.constant 0 : index
    %10 = tpu.strided_load %arg5[%c0_14, %c0_15, %c0_16] {strides = array<i32: 1, 4, 1>} : memref<2x16x4xf32, #tpu.memory_space<vmem>>, vector<2x4x4xf32>
    %c0_17 = arith.constant 0 : index
    %c1 = arith.constant 1 : index
    %c0_18 = arith.constant 0 : index
    %11 = tpu.strided_load %arg5[%c0_17, %c1, %c0_18] {strides = array<i32: 1, 4, 1>} : memref<2x16x4xf32, #tpu.memory_space<vmem>>, vector<2x4x4xf32>
    %12 = arith.addf %10, %11 : vector<2x4x4xf32>
    %c0_19 = arith.constant 0 : index
    %c2 = arith.constant 2 : index
    %c0_20 = arith.constant 0 : index
    %13 = tpu.strided_load %arg5[%c0_19, %c2, %c0_20] {strides = array<i32: 1, 4, 1>} : memref<2x16x4xf32, #tpu.memory_space<vmem>>, vector<2x4x4xf32>
    %14 = arith.addf %12, %13 : vector<2x4x4xf32>
    %c0_21 = arith.constant 0 : index
    %c3 = arith.constant 3 : index
    %c0_22 = arith.constant 0 : index
    %15 = tpu.strided_load %arg5[%c0_21, %c3, %c0_22] {strides = array<i32: 1, 4, 1>} : memref<2x16x4xf32, #tpu.memory_space<vmem>>, vector<2x4x4xf32>
    %16 = arith.addf %14, %15 : vector<2x4x4xf32>
    %cst_23 = arith.constant 0.000000e+00 : f32
    %17 = vector.broadcast %cst_23 : f32 to vector<2x4x1xf32>
    %cst_24 = arith.constant 0.000000e+00 : f32
    %18 = vector.broadcast %cst_24 : f32 to vector<2x1x4xf32>
    %19 = vector.extract_strided_slice %16 {offsets = [0, 0, 0], sizes = [2, 4, 3], strides = [1, 1, 1]} : vector<2x4x4xf32> to vector<2x4x3xf32>
    %20 = tpu.concatenate %17, %19 in 2 : vector<2x4x1xf32>, vector<2x4x3xf32> -> vector<2x4x4xf32>
    %21 = vector.extract_strided_slice %16 {offsets = [0, 0, 1], sizes = [2, 4, 3], strides = [1, 1, 1]} : vector<2x4x4xf32> to vector<2x4x3xf32>
    %22 = tpu.concatenate %21, %17 in 2 : vector<2x4x3xf32>, vector<2x4x1xf32> -> vector<2x4x4xf32>
    %23 = vector.extract_strided_slice %16 {offsets = [0, 0, 0], sizes = [2, 3, 4], strides = [1, 1, 1]} : vector<2x4x4xf32> to vector<2x3x4xf32>
    %24 = tpu.concatenate %18, %23 in 1 : vector<2x1x4xf32>, vector<2x3x4xf32> -> vector<2x4x4xf32>
    %25 = vector.extract_strided_slice %16 {offsets = [0, 1, 0], sizes = [2, 3, 4], strides = [1, 1, 1]} : vector<2x4x4xf32> to vector<2x3x4xf32>
    %26 = tpu.concatenate %25, %18 in 1 : vector<2x3x4xf32>, vector<2x1x4xf32> -> vector<2x4x4xf32>
    %27 = arith.subf %16, %20 : vector<2x4x4xf32>
    %28 = arith.subf %16, %22 : vector<2x4x4xf32>
    %29 = arith.subf %16, %24 : vector<2x4x4xf32>
    %30 = arith.subf %16, %26 : vector<2x4x4xf32>
    %31 = arith.mulf %27, %27 : vector<2x4x4xf32>
    %32 = arith.mulf %28, %28 : vector<2x4x4xf32>
    %33 = arith.addf %31, %32 : vector<2x4x4xf32>
    %34 = arith.mulf %29, %29 : vector<2x4x4xf32>
    %35 = arith.addf %33, %34 : vector<2x4x4xf32>
    %36 = arith.mulf %30, %30 : vector<2x4x4xf32>
    %37 = arith.addf %35, %36 : vector<2x4x4xf32>
    %c0_25 = arith.constant 0 : index
    %c0_26 = arith.constant 0 : index
    %c0_27 = arith.constant 0 : index
    %c0_28 = arith.constant 0 : index
    %38 = vector.load %arg4[%c0_25, %c0_26, %c0_27, %c0_28] : memref<2x1x4x4xf32, #tpu.memory_space<vmem>>, vector<2x1x4x4xf32>
    %39 = vector.shape_cast %38 : vector<2x1x4x4xf32> to vector<2x4x4xf32>
    %40 = vector.shape_cast %37 : vector<2x4x4xf32> to vector<2x1x4x4xf32>
    tpu.vector_store %arg4[%c0_25, %c0_26, %c0_27, %c0_28], %40 {strides = array<i32>} : memref<2x1x4x4xf32, #tpu.memory_space<vmem>>, vector<2x1x4x4xf32>,
    return
  }
  func.func @transform_0(%arg0: i32) -> (i32, i32) {
    %c0_i32 = arith.constant 0 : i32
    %c0_i32_0 = arith.constant 0 : i32
    %c0_i32_1 = arith.constant 0 : i32
    return %c0_i32, %c0_i32_0 : i32, i32
  }
  func.func @transform_1(%arg0: i32) -> (i32, i32, i32, i32) {
    %c0_i32 = arith.constant 0 : i32
    %c0_i32_0 = arith.constant 0 : i32
    %c0_i32_1 = arith.constant 0 : i32
    %c0_i32_2 = arith.constant 0 : i32
    return %arg0, %c0_i32, %c0_i32_0, %c0_i32_1 : i32, i32, i32, i32
  }
  func.func @transform_2(%arg0: i32) -> (i32, i32, i32, i32) {
    %c0_i32 = arith.constant 0 : i32
    %c0_i32_0 = arith.constant 0 : i32
    %c0_i32_1 = arith.constant 0 : i32
    %c0_i32_2 = arith.constant 0 : i32
    return %arg0, %c0_i32, %c0_i32_0, %c0_i32_1 : i32, i32, i32, i32
  }
  func.func @transform_3(%arg0: i32) -> (i32, i32, i32, i32) {
    %c0_i32 = arith.constant 0 : i32
    %c0_i32_0 = arith.constant 0 : i32
    %c0_i32_1 = arith.constant 0 : i32
    %c0_i32_2 = arith.constant 0 : i32
    return %arg0, %c0_i32, %c0_i32_0, %c0_i32_1 : i32, i32, i32, i32
  }
}

</mosaic_0001>

<llo_original>
// kernel: tpu_custom_call.1
$region0: #{tpu_custom_call.1}
  #allocation0 [shape = 'u32[]', space=smem, size = 0x4, offset = 0x4, fixed_abs, tag = 'smem constant byte address 0x4 - core index']
  #allocation1 [shape = 'u32[144,128]{1,0:T(1,128)}', space=vmem, size = 0x12000, scoped, tag = 'internal scratch']
  #allocation2 [shape = 'f32[2,16,4]{2,1,0:T(8,128)}', space=vmem, size = 0x4000, scoped, tag = 'scratch operand']
  %s0 = inlined_call_operand.vmem [shape: f32[16,4], index: 0, kind: input, shape index: {}]
  %s1 = inlined_call_operand.hbm [shape: f32[2,4,16,16], index: 1, kind: input, shape index: {}]
  %s2 = inlined_call_operand.hbm [shape: f32[2,4,16,16], index: 2, kind: input, shape index: {}]
  %s3 = inlined_call_operand.hbm [shape: f32[2,1,4,4], index: 3, kind: output, shape index: {}]
  %s4 = sld [smem:[#allocation0]]
  $region30: #{tpu_custom_call.1} parent=0
    _
  %s6 = ssub.s32 1, %s4
  %s7 = scalar_select 0, %s6, %s4
  $region1: #{tpu_custom_call.1} parent=0
    #allocation3 [shape = 'u8[65536]{0}', space=vmem, size = 0x10000, scoped, tag = 'input window, operand 1, single buffered']
    #allocation4 [shape = 's32[1]{0}', space=sflag, size = 0x4, scoped, tag = 'scoped memory for tpu_custom_call.1']
    #allocation5 [shape = 's32[1]{0}', space=sflag, size = 0x4, scoped, tag = 'scoped memory for tpu_custom_call.1']
    #allocation6 [shape = 'u8[65536]{0}', space=vmem, size = 0x10000, scoped, tag = 'input window, operand 2, single buffered']
    #allocation7 [shape = 's32[1]{0}', space=sflag, size = 0x4, scoped, tag = 'scoped memory for tpu_custom_call.1']
    #allocation8 [shape = 'u8[4096]{0}', space=vmem, size = 0x1000, scoped, tag = 'output window, operand 0, single buffered']
    %8 = vsyncpa [#allocation4], 0
    %9 = vsyncpa [#allocation7], 0
    %10 = vsyncpa [#allocation5], 0
    // Predicated region
    $region2: #{tpu_custom_call.1} parent=1 // pred_check
      _
    $region3: #{tpu_custom_call.1} parent=1 // pred_check_branch
      %12 = sbr.rel (0) target = $region5
    $region4: #{tpu_custom_call.1} parent=1 // pred_region
      _
    $region5: #{tpu_custom_call.1} parent=1 // pred_fallthru
      _
    // Predicated region
    $region6: #{tpu_custom_call.1} parent=1 // pred_check
      _
    $region7: #{tpu_custom_call.1} parent=1 // pred_check_branch
      %14 = sbr.rel (0) target = $region9
    $region8: #{tpu_custom_call.1} parent=1 // pred_region
      %s16 = ssub.s32 2048, 2048
      %17 = vsyncadd [#allocation4], %s16
      %s18 = sshll.u32 [#allocation3], 4
      %s19 = int_to_ptr.vmem [resolvable:$true] %s18
      %24 = dma.hbm_to_vmem [thread:$0]  %s1, 2048, %s19, [#allocation4], 128, 128, 8
    $region9: #{tpu_custom_call.1} parent=1 // pred_fallthru
      _
    // Predicated region
    $region10: #{tpu_custom_call.1} parent=1 // pred_check
      _
    $region11: #{tpu_custom_call.1} parent=1 // pred_check_branch
      %26 = sbr.rel (0) target = $region13
    $region12: #{tpu_custom_call.1} parent=1 // pred_region
      %s28 = ssub.s32 2048, 2048
      %29 = vsyncadd [#allocation7], %s28
      %s30 = sshll.u32 [#allocation6], 4
      %s31 = int_to_ptr.vmem [resolvable:$true] %s30
      %36 = dma.hbm_to_vmem [thread:$0]  %s2, 2048, %s31, [#allocation7], 128, 128, 8
    $region13: #{tpu_custom_call.1} parent=1 // pred_fallthru
      _
    // Predicated region
    $region14: #{tpu_custom_call.1} parent=1 // pred_check
      _
    $region15: #{tpu_custom_call.1} parent=1 // pred_check_branch
      %38 = sbr.rel (0) target = $region17
    $region16: #{tpu_custom_call.1} parent=1 // pred_region
      %39 = dma.done [#allocation4], 2048
    $region17: #{tpu_custom_call.1} parent=1 // pred_fallthru
      _
    // Predicated region
    $region18: #{tpu_custom_call.1} parent=1 // pred_check
      _
    $region19: #{tpu_custom_call.1} parent=1 // pred_check_branch
      %41 = sbr.rel (0) target = $region21
    $region20: #{tpu_custom_call.1} parent=1 // pred_region
      %42 = dma.done [#allocation7], 2048
    $region21: #{tpu_custom_call.1} parent=1 // pred_fallthru
      _
    %v43 = vld [vmem:[#allocation3] sm:$0xff]
    %v44 = vld [vmem:[#allocation3 + $0x8] sm:$0xff]
    %v45 = vld [vmem:[#allocation3 + $0x10] sm:$0xff]
    %v46 = vld [vmem:[#allocation3 + $0x18] sm:$0xff]
    %v47 = vld [vmem:[#allocation3 + $0x20] sm:$0xff]
    %v48 = vld [vmem:[#allocation3 + $0x28] sm:$0xff]
    %v49 = vld [vmem:[#allocation3 + $0x30] sm:$0xff]
    %v50 = vld [vmem:[#allocation3 + $0x38] sm:$0xff]
    %v51 = vld [vmem:[#allocation3 + $0x40] sm:$0xff]
    %v52 = vld [vmem:[#allocation3 + $0x48] sm:$0xff]
    %v53 = vld [vmem:[#allocation3 + $0x50] sm:$0xff]
    %v54 = vld [vmem:[#allocation3 + $0x58] sm:$0xff]
    %v55 = vld [vmem:[#allocation3 + $0x60] sm:$0xff]
    %v56 = vld [vmem:[#allocation3 + $0x68] sm:$0xff]
    %v57 = vld [vmem:[#allocation3 + $0x70] sm:$0xff]
    %v58 = vld [vmem:[#allocation3 + $0x78] sm:$0xff]
    %vm59 = vcmask 130048
    %v60 = vsel %vm59, %v43, 0.0
    %v61 = vsel %vm59, %v45, 0.0
    %v62 = vadd.f32 %v60, %v61
    %v63 = vsel %vm59, %v47, 0.0
    %v64 = vadd.f32 %v62, %v63
    %v65 = vsel %vm59, %v49, 0.0
    %v66 = vadd.f32 %v64, %v65
    %v67 = vsel %vm59, %v44, 0.0
    %v68 = vsel %vm59, %v46, 0.0
    %v69 = vadd.f32 %v67, %v68
    %v70 = vsel %vm59, %v48, 0.0
    %v71 = vadd.f32 %v69, %v70
    %v72 = vsel %vm59, %v50, 0.0
    %v73 = vadd.f32 %v71, %v72
    %v74 = vsel %vm59, %v51, 0.0
    %v75 = vsel %vm59, %v53, 0.0
    %v76 = vadd.f32 %v74, %v75
    %v77 = vsel %vm59, %v55, 0.0
    %v78 = vadd.f32 %v76, %v77
    %v79 = vsel %vm59, %v57, 0.0
    %v80 = vadd.f32 %v78, %v79
    %v81 = vsel %vm59, %v52, 0.0
    %v82 = vsel %vm59, %v54, 0.0
    %v83 = vadd.f32 %v81, %v82
    %v84 = vsel %vm59, %v56, 0.0
    %v85 = vadd.f32 %v83, %v84
    %v86 = vsel %vm59, %v58, 0.0
    %v87 = vadd.f32 %v85, %v86
    %v88 = vld [vmem:[#allocation6] sm:$0xff]
    %v89 = vld [vmem:[#allocation6 + $0x8] sm:$0xff]
    %v90 = vld [vmem:[#allocation6 + $0x10] sm:$0xff]
    %v91 = vld [vmem:[#allocation6 + $0x18] sm:$0xff]
    %v92 = vld [vmem:[#allocation6 + $0x20] sm:$0xff]
    %v93 = vld [vmem:[#allocation6 + $0x28] sm:$0xff]
    %v94 = vld [vmem:[#allocation6 + $0x30] sm:$0xff]
    %v95 = vld [vmem:[#allocation6 + $0x38] sm:$0xff]
    %v96 = vld [vmem:[#allocation6 + $0x40] sm:$0xff]
    %v97 = vld [vmem:[#allocation6 + $0x48] sm:$0xff]
    %v98 = vld [vmem:[#allocation6 + $0x50] sm:$0xff]
    %v99 = vld [vmem:[#allocation6 + $0x58] sm:$0xff]
    %v100 = vld [vmem:[#allocation6 + $0x60] sm:$0xff]
    %v101 = vld [vmem:[#allocation6 + $0x68] sm:$0xff]
    %v102 = vld [vmem:[#allocation6 + $0x70] sm:$0xff]
    %v103 = vld [vmem:[#allocation6 + $0x78] sm:$0xff]
    %v104 = vsel %vm59, %v88, 0.0
    %v105 = vsel %vm59, %v90, 0.0
    %v106 = vadd.f32 %v104, %v105
    %v107 = vsel %vm59, %v92, 0.0
    %v108 = vadd.f32 %v106, %v107
    %v109 = vsel %vm59, %v94, 0.0
    %v110 = vadd.f32 %v108, %v109
    %v111 = vsel %vm59, %v89, 0.0
    %v112 = vsel %vm59, %v91, 0.0
    %v113 = vadd.f32 %v111, %v112
    %v114 = vsel %vm59, %v93, 0.0
    %v115 = vadd.f32 %v113, %v114
    %v116 = vsel %vm59, %v95, 0.0
    %v117 = vadd.f32 %v115, %v116
    %v118 = vsel %vm59, %v96, 0.0
    %v119 = vsel %vm59, %v98, 0.0
    %v120 = vadd.f32 %v118, %v119
    %v121 = vsel %vm59, %v100, 0.0
    %v122 = vadd.f32 %v120, %v121
    %v123 = vsel %vm59, %v102, 0.0
    %v124 = vadd.f32 %v122, %v123
    %v125 = vsel %vm59, %v97, 0.0
    %v126 = vsel %vm59, %v99, 0.0
    %v127 = vadd.f32 %v125, %v126
    %v128 = vsel %vm59, %v101, 0.0
    %v129 = vadd.f32 %v127, %v128
    %v130 = vsel %vm59, %v103, 0.0
    %v131 = vadd.f32 %v129, %v130
    %v132 = vsub.f32 %v66, %v110
    %v133 = vsub.f32 %v73, %v117
    %v134 = vsub.f32 %v80, %v124
    %v135 = vsub.f32 %v87, %v131
    %v136 = vld [vmem:[%s0] sm:$0xff]
    %v137 = vld [vmem:[%s0 + $0x8] sm:$0xff]
    %v139 = vsel %vm59, %v132, 0
    %v142 = vsel %vm59, %v133, 0
    %v145 = vsel %vm59, %v134, 0
    %v148 = vsel %vm59, %v135, 0
    %150 = vmatprep.subr.mxu0 0.0
    %151 = vmatpush1.msra.mxu0 %v136
    %152 = vmatprep.subr.mxu0 0.0
    %153 = vmatpush1.msra.mxu0 %v137
    %154 = vmatprep.subr.mxu0 0.0
    %155 = vmatpush1.msra.mxu0 0.0
    %156 = vmatprep.subr.mxu0 0.0
    %157 = vmatpush1.msra.mxu0 0.0
    %158 = vmatprep.subr.mxu0 0.0
    %159 = vmatpush1.msra.mxu0 0.0
    %160 = vmatprep.subr.mxu0 0.0
    %161 = vmatpush1.msra.mxu0 0.0
    %162 = vmatprep.subr.mxu0 0.0
    %163 = vmatpush1.msra.mxu0 0.0
    %164 = vmatprep.subr.mxu0 0.0
    %165 = vmatpush1.msra.mxu0 0.0
    %166 = vmatprep.subr.mxu0 0.0
    %167 = vmatpush1.msra.mxu0 0.0
    %168 = vmatprep.subr.mxu0 0.0
    %169 = vmatpush1.msra.mxu0 0.0
    %170 = vmatprep.subr.mxu0 0.0
    %171 = vmatpush1.msra.mxu0 0.0
    %172 = vmatprep.subr.mxu0 0.0
    %173 = vmatpush1.msra.mxu0 0.0
    %174 = vmatprep.subr.mxu0 0.0
    %175 = vmatpush1.msra.mxu0 0.0
    %176 = vmatprep.subr.mxu0 0.0
    %177 = vmatpush1.msra.mxu0 0.0
    %178 = vmatprep.subr.mxu0 0.0
    %179 = vmatpush1.msra.mxu0 0.0
    %180 = vmatprep.subr.mxu0 0.0
    %181 = vmatpush1.msra.mxu0 0.0
    %182 = vmatprep.subr.mxu0 0.0
    %183 = vmatpush1.msra.mxu0 0.0
    %184 = vmatprep.subr.mxu0 0.0
    %185 = vmatpush1.msra.mxu0 0.0
    %186 = vmatprep.subr.mxu0 0.0
    %187 = vmatpush1.msra.mxu0 0.0
    %188 = vmatprep.subr.mxu0 0.0
    %189 = vmatpush1.msra.mxu0 0.0
    %190 = vmatprep.subr.mxu0 0.0
    %191 = vmatpush1.msra.mxu0 0.0
    %192 = vmatprep.subr.mxu0 0.0
    %193 = vmatpush1.msra.mxu0 0.0
    %194 = vmatprep.subr.mxu0 0.0
    %195 = vmatpush1.msra.mxu0 0.0
    %196 = vmatprep.subr.mxu0 0.0
    %197 = vmatpush1.msra.mxu0 0.0
    %198 = vmatprep.subr.mxu0 0.0
    %199 = vmatpush1.msra.mxu0 0.0
    %200 = vmatprep.subr.mxu0 0.0
    %201 = vmatpush1.msra.mxu0 0.0
    %202 = vmatprep.subr.mxu0 0.0
    %203 = vmatpush1.msra.mxu0 0.0
    %204 = vmatprep.subr.mxu0 0.0
    %205 = vmatpush1.msra.mxu0 0.0
    %206 = vmatprep.subr.mxu0 0.0
    %207 = vmatpush1.msra.mxu0 0.0
    %208 = vmatprep.subr.mxu0 0.0
    %209 = vmatpush1.msra.mxu0 0.0
    %210 = vmatprep.subr.mxu0 0.0
    %211 = vmatpush1.msra.mxu0 0.0
    %212 = vmatprep.subr.mxu0 0.0
    %213 = vmatpush1.msra.mxu0 0.0
    %214 = vmatprep.mubr.f32.mxu0 0.0
    %215 = vmatmul.mubr.f32.gmra.mrb[0].mxu0 %v139
    %v216 = vpop.f32.mrb[0].mxu0
    %v217 = vadd.f32 0.0, %v216
    %v218 = vpop.f32.mrb[0].mxu0
    %219 = vmatprep.mubr.f32.mxu0 0.0
    %220 = vmatmul.mubr.f32.gmra.mrb[0].mxu0 %v142
    %v221 = vpop.f32.mrb[0].mxu0
    %v222 = vadd.f32 0.0, %v221
    %v223 = vpop.f32.mrb[0].mxu0
    %224 = vmatprep.mubr.f32.mxu0 0.0
    %225 = vmatmul.mubr.f32.gmra.mrb[0].mxu0 %v145
    %v226 = vpop.f32.mrb[0].mxu0
    %v227 = vadd.f32 0.0, %v226
    %v228 = vpop.f32.mrb[0].mxu0
    %229 = vmatprep.mubr.f32.mxu0 0.0
    %230 = vmatmul.mubr.f32.gmra.mrb[0].mxu0 %v148
    %v231 = vpop.f32.mrb[0].mxu0
    %v232 = vadd.f32 0.0, %v231
    %v233 = vpop.f32.mrb[0].mxu0
    %234 = vdwg.mxu0
    %vm235 = vcmask 31744
    %236 = vst.msk [vmem:[#allocation2] sm:$0xff] %vm235, %v217
    %237 = vst.msk [vmem:[#allocation2 + $0x8] sm:$0xff] %vm235, %v222
    %238 = vst.msk [vmem:[#allocation2 + $0x10] sm:$0xff] %vm235, %v227
    %239 = vst.msk [vmem:[#allocation2 + $0x18] sm:$0xff] %vm235, %v232
    %v240 = vld [vmem:[#allocation2] ss:$4 sm:$0xf]
    %s241 = scalar_lea.vmem [#allocation2], 16
    %v242 = vld [vmem:[%s241] ss:$4 sm:$0xf]
    %s243 = scalar_lea.vmem [#allocation2], 1
    %v244 = vld [vmem:[%s243] ss:$4 sm:$0xf]
    %s245 = scalar_lea.vmem [#allocation2], 17
    %v246 = vld [vmem:[%s245] ss:$4 sm:$0xf]
    %v247 = vadd.f32 %v240, %v244
    %v248 = vadd.f32 %v242, %v246
    %s249 = scalar_lea.vmem [#allocation2], 2
    %v250 = vld [vmem:[%s249] ss:$4 sm:$0xf]
    %s251 = scalar_lea.vmem [#allocation2], 18
    %v252 = vld [vmem:[%s251] ss:$4 sm:$0xf]
    %v253 = vadd.f32 %v247, %v250
    %v254 = vadd.f32 %v248, %v252
    %s255 = scalar_lea.vmem [#allocation2], 3
    %v256 = vld [vmem:[%s255] ss:$4 sm:$0xf]
    %s257 = scalar_lea.vmem [#allocation2], 19
    %v258 = vld [vmem:[%s257] ss:$4 sm:$0xf]
    %v259 = vadd.f32 %v253, %v256
    %v260 = vadd.f32 %v254, %v258
    %263 = vrot.lane.b32.xlu0 %v259, 1
    %v264 = vpop.permute.xlu0 %263
    %265 = vrot.lane.b32.xlu0 %v260, 1
    %v266 = vpop.permute.xlu0 %265
    %vm269 = vcmask 7168
    %v270 = vsel %vm269, 0.0, %v264
    %v271 = vsel %vm269, 0.0, %v266
    %272 = vrot.lane.b32.xlu0 %v259, 127
    %v273 = vpop.permute.xlu0 %272
    %274 = vrot.lane.b32.xlu0 %v260, 127
    %v275 = vpop.permute.xlu0 %274
    %vm278 = vcmask 23552
    %v279 = vsel %vm278, %v273, 0.0
    %v280 = vsel %vm278, %v275, 0.0
    %v281 = vrot.slane %v259, 7
    %v282 = vrot.slane %v260, 7
    %vm285 = vcmask 1040384
    %v286 = vsel %vm285, 0.0, %v281
    %v287 = vsel %vm285, 0.0, %v282
    %v288 = vrot.slane %v259, 1
    %v289 = vrot.slane %v260, 1
    %vm292 = vcmask 1042432
    %v293 = vsel %vm292, %v288, 0.0
    %v294 = vsel %vm292, %v289, 0.0
    %v295 = vsub.f32 %v259, %v270
    %v296 = vsub.f32 %v260, %v271
    %v297 = vsub.f32 %v259, %v279
    %v298 = vsub.f32 %v260, %v280
    %v299 = vsub.f32 %v259, %v286
    %v300 = vsub.f32 %v260, %v287
    %v301 = vsub.f32 %v259, %v293
    %v302 = vsub.f32 %v260, %v294
    %v303 = vmul.f32 %v295, %v295
    %v304 = vmul.f32 %v296, %v296
    %v305 = vmul.f32 %v297, %v297
    %v306 = vmul.f32 %v298, %v298
    %v307 = vadd.f32 %v303, %v305
    %v308 = vadd.f32 %v304, %v306
    %v309 = vmul.f32 %v299, %v299
    %v310 = vmul.f32 %v300, %v300
    %v311 = vadd.f32 %v307, %v309
    %v312 = vadd.f32 %v308, %v310
    %v313 = vmul.f32 %v301, %v301
    %v314 = vmul.f32 %v302, %v302
    %v315 = vadd.f32 %v311, %v313
    %v316 = vadd.f32 %v312, %v314
    %vm317 = vcmask 27648
    %318 = vst.msk [vmem:[#allocation8] sm:$0xf] %vm317, %v315
    %319 = vst.msk [vmem:[#allocation8 + $0x4] sm:$0xf] %vm317, %v316
    // Predicated region
    $region22: #{tpu_custom_call.1} parent=1 // pred_check
      _
    $region23: #{tpu_custom_call.1} parent=1 // pred_check_branch
      %321 = sbr.rel (0) target = $region25
    $region24: #{tpu_custom_call.1} parent=1 // pred_region
      %s323 = ssub.s32 128, 128
      %324 = vsyncadd [#allocation5], %s323
      %s325 = sshll.u32 [#allocation8], 4
      %s326 = int_to_ptr.vmem [resolvable:$true] %s325
      %331 = dma.vmem_to_hbm [thread:$0]  %s326, 128, %s3, [#allocation5], 64, 64, 4
    $region25: #{tpu_custom_call.1} parent=1 // pred_fallthru
      _
    // Predicated region
    $region26: #{tpu_custom_call.1} parent=1 // pred_check
      _
    $region27: #{tpu_custom_call.1} parent=1 // pred_check_branch
      %333 = sbr.rel (0) target = $region29
    $region28: #{tpu_custom_call.1} parent=1 // pred_region
      %334 = dma.done [#allocation5], 128
    $region29: #{tpu_custom_call.1} parent=1 // pred_fallthru
      _
    %335 = vsyncpa [#allocation4], 1
    %336 = vsyncpa [#allocation7], 1
    %337 = vsyncpa [#allocation5], 1

</llo_original>
